<compile_context>
chip_gen: v7x
topology: tpu7x:2x2x1
jax: 0.10.0
libtpu: 0.0.40
codegen_flags: <defaults>
</compile_context>

<pallas_src>
import functools

import numpy as np
import jax
import jax.numpy as jnp
from jax.experimental import pallas as pl
from jax.experimental.pallas import tpu as pltpu


def _band_matrix(L, kernel_size, stride, pad, l_out):
    """(l_out, L) f32 matrix folding replicate padding, 1/K averaging and the
    stride into one banded weight matrix: out[t] = sum_s A[t, s] * x[s]."""
    a = np.zeros((l_out, L), dtype=np.float32)
    w = 1.0 / float(kernel_size)
    for t in range(l_out):
        base = t * stride - pad
        for j in range(kernel_size):
            s = base + j
            s = 0 if s < 0 else (L - 1 if s > L - 1 else s)
            a[t, s] += w
    return jnp.asarray(a)


def _moving_avg_kernel(a_ref, x_ref, o_ref, *, bt):
    """One grid step: (bt, L, Ct) input slab -> (bt, l_out, Ct) output slab.

    a_ref : (l_out, L) f32 banded averaging matrix (same block every step)
    x_ref : (bt, L, Ct) input tile
    o_ref : (bt, l_out, Ct) output tile
    """
    a = a_ref[...]                                    # (l_out, L), f32
    for i in range(bt):                               # bt is a small static int
        xi = x_ref[i].astype(jnp.float32)             # (L, Ct)
        yi = jnp.dot(a, xi, preferred_element_type=jnp.float32)   # MXU
        o_ref[i] = yi.astype(o_ref.dtype)


def _vmem_capacity_bytes():
    try:
        return int(pltpu.get_tpu_info().vmem_capacity_bytes)
    except Exception:
        return 64 << 20   # conservative default (v7x per-core size); safe everywhere


def _block_bytes(bt, ct, L, l_out, itemsize):
    x_blk = bt * L * ct * itemsize
    o_blk = bt * l_out * ct * itemsize
    work = bt * l_out * ct * 4 + L * ct * 4           # f32 matmul result + one f32 cast slab
    return 2 * (x_blk + o_blk) + work                 # double-buffered in/out + working set


def _divisors_desc(n):
    return [d for d in range(n, 0, -1) if n % d == 0]


def _choose_tiles(B, L, C, l_out, itemsize, budget, ensure_two_steps):
    # Channel (lane) tile: a multiple of 128 dividing C when possible, as wide
    # as the VMEM budget allows (no artificial cap); otherwise the full C.
    if C % 128 == 0:
        ct = 128
        for m in range(C, 127, -128):
            if C % m == 0 and _block_bytes(1, m, L, l_out, itemsize) <= budget:
                ct = m
                break
    else:
        ct = C
    # Batch fold: pack as many batches per grid step as the budget allows
    # (amortizes per-step overhead; the (bt, L, C) slab is contiguous in HBM
    # when ct == C).  Cap the static unroll at 16 matmuls per step.
    bt = 1
    for d in _divisors_desc(B):
        if d <= 16 and _block_bytes(d, ct, L, l_out, itemsize) <= budget:
            bt = d
            break
    # v7x has 2 TensorCores per chip: keep >= 2 parallel grid steps when possible.
    if ensure_two_steps and bt == B and (C // ct) == 1 and B >= 2:
        for d in _divisors_desc(B):
            if d < B:
                bt = d
                break
    return bt, ct


def moving_avg(x, kernel_size, stride):
    """x: (B, L, C) -> (B, L_out, C); identical semantics to the torch module."""
    B, L, C = x.shape
    pad = (kernel_size - 1) // 2
    l_pad = L + 2 * pad
    l_out = (l_pad - kernel_size) // stride + 1
    assert l_out >= 1, "sequence too short for this kernel_size/stride"

    itemsize = jnp.dtype(x.dtype).itemsize
    vmem_cap = _vmem_capacity_bytes()
    budget = vmem_cap // 3                        # per-step footprint budget (generation-aware)
    ensure_two_steps = vmem_cap <= (64 << 20)     # proxy for v7x (2 TCs share the grid)

    # Robustness guard: a full-C block for a large non-128-multiple C could
    # exceed the VMEM budget -> split into a 128-multiple chunk + remainder.
    if C % 128 != 0 and C > 128 and _block_bytes(1, C, L, l_out, itemsize) > budget:
        main = (C // 128) * 128
        out_main = moving_avg(x[:, :, :main], kernel_size, stride)
        out_rem = moving_avg(x[:, :, main:], kernel_size, stride)
        return jnp.concatenate([out_main, out_rem], axis=-1)
    # TODO(synk): for C <= 128 with extremely long sequences, additionally tile
    # L_out with a (kernel_size-1) halo on the input block; not needed for
    # typical time-series lengths.

    bt, ct = _choose_tiles(B, L, C, l_out, itemsize, budget, ensure_two_steps)
    n_b = B // bt
    n_c = C // ct

    a_mat = _band_matrix(L, kernel_size, stride, pad, l_out)

    per_step = _block_bytes(bt, ct, L, l_out, itemsize) + 2 * l_out * L * 4
    vmem_limit = int(min(vmem_cap * 3 // 4, max(32 << 20, 2 * per_step)))

    kernel = functools.partial(_moving_avg_kernel, bt=bt)

    return pl.pallas_call(
        kernel,
        out_shape=jax.ShapeDtypeStruct((B, l_out, C), x.dtype),
        grid=(n_b, n_c),
        in_specs=[
            pl.BlockSpec((l_out, L), lambda b, c: (0, 0)),      # band matrix, stays resident
            pl.BlockSpec((bt, L, ct), lambda b, c: (b, 0, c)),  # input slab
        ],
        out_specs=pl.BlockSpec((bt, l_out, ct), lambda b, c: (b, 0, c)),
        compiler_params=pltpu.CompilerParams(
            dimension_semantics=("parallel", "parallel"),
            vmem_limit_bytes=vmem_limit,
        ),
    )(a_mat, x)


def _reference_moving_avg(x, kernel_size, stride):
    """Pure-JAX reference mirroring the PyTorch forward exactly."""
    pad = (kernel_size - 1) // 2
    front = jnp.repeat(x[:, :1, :], pad, axis=1)
    end = jnp.repeat(x[:, -1:, :], pad, axis=1)
    xp = jnp.concatenate([front, x, end], axis=1)  # (B, L_pad, C)
    l_pad = xp.shape[1]
    l_out = (l_pad - kernel_size) // stride + 1
    outs = []
    for t in range(l_out):
        outs.append(jnp.mean(xp[:, t * stride:t * stride + kernel_size, :], axis=1))
    return jnp.stack(outs, axis=1)


if __name__ == "__main__":
    key = jax.random.PRNGKey(0)

    # Primary small config consistent with the module: batch=2, seq=8, hidden=32.
    B, L, C = 2, 8, 32
    kernel_size, stride = 5, 1
    x = jax.random.normal(key, (B, L, C), dtype=jnp.float32)

    out = jax.block_until_ready(moving_avg(x, kernel_size, stride))
    ref = _reference_moving_avg(x, kernel_size, stride)
    assert out.shape == ref.shape, (out.shape, ref.shape)
    # Tolerance is set to also cover the case where the MXU evaluates f32
    # matmuls via reduced-precision passes at default precision; it is still
    # tight enough to catch any padding / window / stride semantic error.
    assert jnp.allclose(out, ref, atol=1e-2, rtol=1e-3), "mismatch vs reference"

    # Extra correctness checks: larger kernel, stride > 1, channel-tiled C,
    # non-128-multiple C > 128, batch folding.
    for (b, l, c, k, s) in [(2, 8, 32, 25, 1),
                            (2, 16, 32, 4, 2),
                            (2, 16, 256, 5, 1),
                            (4, 12, 64, 3, 3),
                            (1, 24, 160, 7, 1)]:
        xi = jax.random.normal(jax.random.PRNGKey(1), (b, l, c), dtype=jnp.float32)
        oi = jax.block_until_ready(moving_avg(xi, k, s))
        ri = _reference_moving_avg(xi, k, s)
        assert oi.shape == ri.shape, (k, s, oi.shape, ri.shape)
        assert jnp.allclose(oi, ri, atol=1e-2, rtol=1e-3), ("mismatch", b, l, c, k, s)

    print("KERNEL_OK")
</pallas_src>

<mosaic_0001>
module attributes {stable_mosaic.version = 11 : i64} {
  func.func @_moving_avg_kernel(%arg0: i32, %arg1: i32, %arg2: memref<8x8xf32, #tpu.memory_space<vmem>>, %arg3: memref<1x8x32xf32, #tpu.memory_space<vmem>>, %arg4: memref<1x8x32xf32, #tpu.memory_space<vmem>>) attributes {dimension_semantics = [#tpu.dimension_semantics<parallel>, #tpu.dimension_semantics<parallel>], iteration_bounds = array<i64: 2, 1>, scalar_prefetch = 0 : i64, scratch_operands = 0 : i64, tpu.core_type = #tpu.core_type<tc>, window_params = [{pipeline_mode = #tpu.pipeline_mode<synchronous>, transform_indices = @transform_0, window_bounds = array<i64: 8, 8>}, {transform_indices = @transform_1, window_bounds = array<i64: 1, 8, 32>}, {transform_indices = @transform_2, window_bounds = array<i64: 1, 8, 32>}]} {
    %c0 = arith.constant 0 : index
    %c0_0 = arith.constant 0 : index
    %0 = vector.load %arg2[%c0, %c0_0] : memref<8x8xf32, #tpu.memory_space<vmem>>, vector<8x8xf32>
    %c0_1 = arith.constant 0 : index
    %c0_2 = arith.constant 0 : index
    %c0_3 = arith.constant 0 : index
    %1 = vector.load %arg3[%c0_1, %c0_2, %c0_3] : memref<1x8x32xf32, #tpu.memory_space<vmem>>, vector<1x8x32xf32>
    %2 = vector.shape_cast %1 : vector<1x8x32xf32> to vector<8x32xf32>
    %cst = arith.constant dense<0.000000e+00> : vector<8x32xf32>
    %3 = tpu.matmul %0, %2, %cst {dimension_numbers = #tpu.dot_dimension_numbers<[1], [0], [0], [1], [0, 0, 1, 1], [], []>} : vector<8x8xf32>, vector<8x32xf32>, vector<8x32xf32> -> vector<8x32xf32>
    %c0_4 = arith.constant 0 : index
    %c0_5 = arith.constant 0 : index
    %c0_6 = arith.constant 0 : index
    %4 = vector.load %arg4[%c0_4, %c0_5, %c0_6] : memref<1x8x32xf32, #tpu.memory_space<vmem>>, vector<1x8x32xf32>
    %5 = vector.shape_cast %4 : vector<1x8x32xf32> to vector<8x32xf32>
    %6 = vector.shape_cast %3 : vector<8x32xf32> to vector<1x8x32xf32>
    tpu.vector_store %arg4[%c0_4, %c0_5, %c0_6], %6 {strides = array<i32>} : memref<1x8x32xf32, #tpu.memory_space<vmem>>, vector<1x8x32xf32>,
    return
  }
  func.func @transform_0(%arg0: i32, %arg1: i32) -> (i32, i32) {
    %c0_i32 = arith.constant 0 : i32
    %c0_i32_0 = arith.constant 0 : i32
    %c0_i32_1 = arith.constant 0 : i32
    return %c0_i32, %c0_i32_0 : i32, i32
  }
  func.func @transform_1(%arg0: i32, %arg1: i32) -> (i32, i32, i32) {
    %c0_i32 = arith.constant 0 : i32
    %c0_i32_0 = arith.constant 0 : i32
    return %arg0, %c0_i32, %arg1 : i32, i32, i32
  }
  func.func @transform_2(%arg0: i32, %arg1: i32) -> (i32, i32, i32) {
    %c0_i32 = arith.constant 0 : i32
    %c0_i32_0 = arith.constant 0 : i32
    return %arg0, %c0_i32, %arg1 : i32, i32, i32
  }
}

</mosaic_0001>

<llo_original>
// kernel: tpu_custom_call.1
$region0: #{tpu_custom_call.1}
  #allocation0 [shape = 'u32[]', space=smem, size = 0x4, offset = 0x4, fixed_abs, tag = 'smem constant byte address 0x4 - core index']
  #allocation1 [shape = 'u32[144,128]{1,0:T(1,128)}', space=vmem, size = 0x12000, scoped, tag = 'internal scratch']
  %s0 = inlined_call_operand.hbm [shape: f32[8,8], index: 0, kind: input, shape index: {}]
  %s1 = inlined_call_operand.hbm [shape: f32[2,8,32], index: 1, kind: input, shape index: {}]
  %s2 = inlined_call_operand.hbm [shape: f32[2,8,32], index: 2, kind: output, shape index: {}]
  %s3 = sld [smem:[#allocation0]]
  $region49: #{tpu_custom_call.1} parent=0
    _
  %s5 = ssub.s32 1, %s3
  %s6 = scalar_select 0, %s5, %s3
  $region1: #{tpu_custom_call.1} parent=0
    #allocation2 [shape = 'u8[4096]{0}', space=vmem, size = 0x1000, scoped, tag = 'input window, operand 0, single buffered']
    #allocation3 [shape = 's32[2]{0}', space=sflag, size = 0x8, scoped, tag = 'scoped memory for tpu_custom_call.1']
    #allocation4 [shape = 's32[2]{0}', space=sflag, size = 0x8, scoped, tag = 'scoped memory for tpu_custom_call.1']
    #allocation5 [shape = 'u8[8192]{0}', space=vmem, size = 0x2000, scoped, tag = 'input window, operand 1']
    #allocation6 [shape = 's32[2]{0}', space=sflag, size = 0x8, scoped, tag = 'scoped memory for tpu_custom_call.1']
    #allocation7 [shape = 'u8[8192]{0}', space=vmem, size = 0x2000, scoped, tag = 'output window, operand 0']
    %7 = vsyncpa [#allocation3], 0
    %8 = vsyncpa [#allocation6], 0
    %s9 = scalar_lea.sflag [#allocation6], 1
    %10 = vsyncpa %s9, 0
    %11 = vsyncpa [#allocation4], 0
    %s12 = scalar_lea.sflag [#allocation4], 1
    %13 = vsyncpa %s12, 0
    loop: start=0, step=1, limit=4
    $region2: #{tpu_custom_call.1} parent=1 // loop_pre_header
      _
    $region3: #{tpu_custom_call.1} parent=1 // loop_header
      %s15 = sphi 0, %s19
      %p16 = scmp.ge.s32.totalorder %s15, 4
      %s22 = sphi 0, %s34
      %s23 = sphi 0, %s30
      %s24 = sphi 0, %s22
      %s25 = sphi 0, %s23
      %s26 = sphi 0, %s24
      %s27 = sphi 0, %s25
      %s35 = sphi 0, %s35
      %s37 = sphi 0, %s35
      %s38 = sphi 0, %s37
      %s52 = sphi 0, %s38
      %s60 = sphi 0, %s62
      %s63 = sphi 0, %s60
      %s64 = sphi 0, %s63
      %s80 = sphi 0, %s64
      %s88 = sphi 0, %s90
      %s91 = sphi 0, %s88
      %s92 = sphi 0, %s91
      %s108 = sphi 0, %s92
    $region4: #{tpu_custom_call.1} parent=1 // loop_header_branch
      %18 = sbr.rel (%p16) target = $region8
    $region5: #{tpu_custom_call.1} parent=1 // loop_body
      %s20 = ssub.s32 %s15, 1
      %s21 = ssub.s32 %s15, 2
      %s28 = sadd.s32 1, %s23
      %p29 = scmp.ge.s32.totalorder %s28, 1
      %s30 = scalar_select %p29, 0, %s28
      %s31 = sadd.s32 1, %s22
      %s32 = scalar_select %p29, %s31, %s22
      %p33 = scmp.ge.s32.totalorder %s32, 2
      %s34 = scalar_select %p33, 0, %s32
      %s36 = sadd.s32 %s35, 1
      %p39 = scmp.eq.s32.totalorder %s15, 1
      %p40 = scmp.ne.s32.totalorder %s35, %s37
      %p41 = scmp.eq.s32.totalorder %s15, 0
      %p42 = por %p40, %p41
      %p43 = scmp.ne.s32.totalorder %s35, %s37
      %p44 = scmp.eq.s32.totalorder %s20, 1
      %p45 = por %p43, %p44
      %p46 = scmp.ne.s32.totalorder %s37, %s38
      %p47 = scmp.eq.s32.totalorder %s20, 0
      %p48 = por %p46, %p47
      %p49 = scmp.ne.s32.totalorder %s37, %s38
      %p50 = scmp.eq.s32.totalorder %s21, 1
      %p51 = por %p49, %p50
      %p53 = scmp.ne.s32.totalorder %s38, %s52
      %p54 = scmp.eq.s32.totalorder %s21, 0
      %p55 = por %p53, %p54
      %s56 = ssub.s32 %s22, %s34
      %s57 = ssub.s32 %s23, %s30
      %s58 = sor.u32 %s56, %s57
      %p59 = scmp.eq.s32.totalorder %s58, 0
      %s61 = sadd.s32 %s60, 1
      %s62 = scalar_select %p59, %s60, %s61
      %p65 = pneg %p59
      %p66 = scmp.eq.s32.totalorder %s15, 1
      %p67 = por %p65, %p66
      %p68 = scmp.ne.s32.totalorder %s60, %s63
      %p69 = scmp.eq.s32.totalorder %s15, 0
      %p70 = por %p68, %p69
      %p71 = scmp.ne.s32.totalorder %s60, %s63
      %p72 = scmp.eq.s32.totalorder %s20, 1
      %p73 = por %p71, %p72
      %p74 = scmp.ne.s32.totalorder %s63, %s64
      %p75 = scmp.eq.s32.totalorder %s20, 0
      %p76 = por %p74, %p75
      %p77 = scmp.ne.s32.totalorder %s63, %s64
      %p78 = scmp.eq.s32.totalorder %s21, 1
      %p79 = por %p77, %p78
      %p81 = scmp.ne.s32.totalorder %s64, %s80
      %p82 = scmp.eq.s32.totalorder %s21, 0
      %p83 = por %p81, %p82
      %s84 = ssub.s32 %s22, %s34
      %s85 = ssub.s32 %s23, %s30
      %s86 = sor.u32 %s84, %s85
      %p87 = scmp.eq.s32.totalorder %s86, 0
      %s89 = sadd.s32 %s88, 1
      %s90 = scalar_select %p87, %s88, %s89
      %p93 = pneg %p87
      %p94 = scmp.eq.s32.totalorder %s15, 1
      %p95 = por %p93, %p94
      %p96 = scmp.ne.s32.totalorder %s88, %s91
      %p97 = scmp.eq.s32.totalorder %s15, 0
      %p98 = por %p96, %p97
      %p99 = scmp.ne.s32.totalorder %s88, %s91
      %p100 = scmp.eq.s32.totalorder %s20, 1
      %p101 = por %p99, %p100
      %p102 = scmp.ne.s32.totalorder %s91, %s92
      %p103 = scmp.eq.s32.totalorder %s20, 0
      %p104 = por %p102, %p103
      %p105 = scmp.ne.s32.totalorder %s91, %s92
      %p106 = scmp.eq.s32.totalorder %s21, 1
      %p107 = por %p105, %p106
      %p109 = scmp.ne.s32.totalorder %s92, %s108
      %p110 = scmp.eq.s32.totalorder %s21, 0
      %p111 = por %p109, %p110
      %p112 = scmp.le.s32.totalorder 1, %s15
      %p113 = scmp.lt.s32.totalorder %s15, 3
      %p114 = pnand %p112, %p113
      %p115 = pneg %p114
      // Predicated region
      $region9: #{tpu_custom_call.1} parent=5 // pred_check
        _
      $region10: #{tpu_custom_call.1} parent=5 // pred_check_branch
        %117 = sbr.rel (%p114) target = $region12
      $region11: #{tpu_custom_call.1} parent=5 // pred_region
        %s118 = ssub.s32 %s15, 1
        // Predicated region
        $region13: #{tpu_custom_call.1} parent=11 // pred_check
          %p119 = pneg %p48
        $region14: #{tpu_custom_call.1} parent=11 // pred_check_branch
          %121 = sbr.rel (%p119) target = $region16
        $region15: #{tpu_custom_call.1} parent=11 // pred_region
          %s123 = ssub.s32 128, 128
          %124 = vsyncadd [#allocation3], %s123
          %s126 = sshll.u32 [#allocation2], 4
          %s127 = int_to_ptr.vmem [resolvable:$true] %s126
          %129 = dma.hbm_to_vmem [thread:$0]  %s0, 128, %s127, [#allocation3]
        $region16: #{tpu_custom_call.1} parent=11 // pred_fallthru
          _
      $region12: #{tpu_custom_call.1} parent=5 // pred_fallthru
        _
      %p130 = scmp.lt.s32.totalorder %s15, 2
      // Predicated region
      $region17: #{tpu_custom_call.1} parent=5 // pred_check
        %p131 = pneg %p130
      $region18: #{tpu_custom_call.1} parent=5 // pred_check_branch
        %133 = sbr.rel (%p131) target = $region20
      $region19: #{tpu_custom_call.1} parent=5 // pred_region
        // Predicated region
        $region21: #{tpu_custom_call.1} parent=19 // pred_check
          %p134 = pneg %p70
        $region22: #{tpu_custom_call.1} parent=19 // pred_check_branch
          %136 = sbr.rel (%p134) target = $region24
        $region23: #{tpu_custom_call.1} parent=19 // pred_region
          %s137 = sand.u32 %s60, 1
          %s138 = scalar_lea.sflag [#allocation6], %s137
          %s139 = sand.u32 %s60, 1
          %s140 = smul.addr %s139, 8
          %s141 = scalar_lea.vmem [#allocation5], %s140
          %s143 = ssub.s32 128, 128
          %144 = vsyncadd %s138, %s143
          %s145 = sadd.s32 %s23, %s22
          %s146 = smul.addr %s145, 128
          %s147 = scalar_lea.hbm %s1, %s146
          %s149 = sshll.u32 %s141, 4
          %s150 = int_to_ptr.vmem [resolvable:$true] %s149
          %152 = dma.hbm_to_vmem [thread:$0]  %s147, 128, %s150, %s138
        $region24: #{tpu_custom_call.1} parent=19 // pred_fallthru
          _
      $region20: #{tpu_custom_call.1} parent=5 // pred_fallthru
        _
      %p153 = scmp.le.s32.totalorder 1, %s15
      %p154 = scmp.lt.s32.totalorder %s15, 3
      %p155 = pnand %p153, %p154
      %p156 = pneg %p155
      // Predicated region
      $region25: #{tpu_custom_call.1} parent=5 // pred_check
        _
      $region26: #{tpu_custom_call.1} parent=5 // pred_check_branch
        %158 = sbr.rel (%p155) target = $region28
      $region27: #{tpu_custom_call.1} parent=5 // pred_region
        %s159 = ssub.s32 %s15, 1
        // Predicated region
        $region29: #{tpu_custom_call.1} parent=27 // pred_check
          %p160 = pneg %p48
        $region30: #{tpu_custom_call.1} parent=27 // pred_check_branch
          %162 = sbr.rel (%p160) target = $region32
        $region31: #{tpu_custom_call.1} parent=27 // pred_region
          %163 = dma.done [#allocation3], 128
        $region32: #{tpu_custom_call.1} parent=27 // pred_fallthru
          _
        %s164 = sand.u32 %s63, 1
        %s165 = scalar_lea.sflag [#allocation6], %s164
        %s166 = sand.u32 %s63, 1
        %s167 = smul.addr %s166, 8
        %s168 = scalar_lea.vmem [#allocation5], %s167
        // Predicated region
        $region33: #{tpu_custom_call.1} parent=27 // pred_check
          %p169 = pneg %p76
        $region34: #{tpu_custom_call.1} parent=27 // pred_check_branch
          %171 = sbr.rel (%p169) target = $region36
        $region35: #{tpu_custom_call.1} parent=27 // pred_region
          %172 = dma.done %s165, 128
        $region36: #{tpu_custom_call.1} parent=27 // pred_fallthru
          _
        %p173 = pneg %p48
        %p174 = pneg %p45
        %s175 = sand.u32 %s63, 1
        %s176 = scalar_lea.sflag [#allocation6], %s175
        %s177 = sand.u32 %s63, 1
        %s178 = smul.addr %s177, 8
        %s179 = scalar_lea.vmem [#allocation5], %s178
        %p180 = pneg %p76
        %p181 = pneg %p73
        %p182 = pneg %p104
        %p183 = pneg %p101
        %s184 = sand.u32 %s91, 1
        %s185 = scalar_lea.sflag [#allocation4], %s184
        %s186 = sand.u32 %s91, 1
        %s187 = smul.addr %s186, 8
        %s188 = scalar_lea.vmem [#allocation7], %s187
        %v189 = vld [vmem:[#allocation2] sm:$0xff]
        %v190 = vld [vmem:[%s168] sm:$0xff]
        %vm191 = vcmask 64512
        %v193 = vsel %vm191, %v189, 0
        %195 = vmatprep.subr.mxu0 0.0
        %196 = vmatpush1.msra.mxu0 %v190
        %197 = vmatprep.subr.mxu0 0.0
        %198 = vmatpush1.msra.mxu0 0.0
        %199 = vmatprep.subr.mxu0 0.0
        %200 = vmatpush1.msra.mxu0 0.0
        %201 = vmatprep.subr.mxu0 0.0
        %202 = vmatpush1.msra.mxu0 0.0
        %203 = vmatprep.subr.mxu0 0.0
        %204 = vmatpush1.msra.mxu0 0.0
        %205 = vmatprep.subr.mxu0 0.0
        %206 = vmatpush1.msra.mxu0 0.0
        %207 = vmatprep.subr.mxu0 0.0
        %208 = vmatpush1.msra.mxu0 0.0
        %209 = vmatprep.subr.mxu0 0.0
        %210 = vmatpush1.msra.mxu0 0.0
        %211 = vmatprep.subr.mxu0 0.0
        %212 = vmatpush1.msra.mxu0 0.0
        %213 = vmatprep.subr.mxu0 0.0
        %214 = vmatpush1.msra.mxu0 0.0
        %215 = vmatprep.subr.mxu0 0.0
        %216 = vmatpush1.msra.mxu0 0.0
        %217 = vmatprep.subr.mxu0 0.0
        %218 = vmatpush1.msra.mxu0 0.0
        %219 = vmatprep.subr.mxu0 0.0
        %220 = vmatpush1.msra.mxu0 0.0
        %221 = vmatprep.subr.mxu0 0.0
        %222 = vmatpush1.msra.mxu0 0.0
        %223 = vmatprep.subr.mxu0 0.0
        %224 = vmatpush1.msra.mxu0 0.0
        %225 = vmatprep.subr.mxu0 0.0
        %226 = vmatpush1.msra.mxu0 0.0
        %227 = vmatprep.subr.mxu0 0.0
        %228 = vmatpush1.msra.mxu0 0.0
        %229 = vmatprep.subr.mxu0 0.0
        %230 = vmatpush1.msra.mxu0 0.0
        %231 = vmatprep.subr.mxu0 0.0
        %232 = vmatpush1.msra.mxu0 0.0
        %233 = vmatprep.subr.mxu0 0.0
        %234 = vmatpush1.msra.mxu0 0.0
        %235 = vmatprep.subr.mxu0 0.0
        %236 = vmatpush1.msra.mxu0 0.0
        %237 = vmatprep.subr.mxu0 0.0
        %238 = vmatpush1.msra.mxu0 0.0
        %239 = vmatprep.subr.mxu0 0.0
        %240 = vmatpush1.msra.mxu0 0.0
        %241 = vmatprep.subr.mxu0 0.0
        %242 = vmatpush1.msra.mxu0 0.0
        %243 = vmatprep.subr.mxu0 0.0
        %244 = vmatpush1.msra.mxu0 0.0
        %245 = vmatprep.subr.mxu0 0.0
        %246 = vmatpush1.msra.mxu0 0.0
        %247 = vmatprep.subr.mxu0 0.0
        %248 = vmatpush1.msra.mxu0 0.0
        %249 = vmatprep.subr.mxu0 0.0
        %250 = vmatpush1.msra.mxu0 0.0
        %251 = vmatprep.subr.mxu0 0.0
        %252 = vmatpush1.msra.mxu0 0.0
        %253 = vmatprep.subr.mxu0 0.0
        %254 = vmatpush1.msra.mxu0 0.0
        %255 = vmatprep.subr.mxu0 0.0
        %256 = vmatpush1.msra.mxu0 0.0
        %257 = vmatprep.subr.mxu0 0.0
        %258 = vmatpush1.msra.mxu0 0.0
        %259 = vmatprep.mubr.f32.mxu0 0.0
        %260 = vmatmul.mubr.f32.gmra.mrb[0].mxu0 %v193
        %v261 = vpop.f32.mrb[0].mxu0
        %v262 = vadd.f32 0.0, %v261
        %v263 = vpop.f32.mrb[0].mxu0
        %264 = vdwg.mxu0
        %vm265 = vcmask 261120
        %266 = vst.msk [vmem:[%s188] sm:$0xff] %vm265, %v262
        %s267 = sand.u32 %s91, 1
        %s268 = scalar_lea.sflag [#allocation4], %s267
        %s269 = sand.u32 %s91, 1
        %s270 = smul.addr %s269, 8
        %s271 = scalar_lea.vmem [#allocation7], %s270
        // Predicated region
        $region37: #{tpu_custom_call.1} parent=27 // pred_check
          %p272 = pneg %p101
        $region38: #{tpu_custom_call.1} parent=27 // pred_check_branch
          %274 = sbr.rel (%p272) target = $region40
        $region39: #{tpu_custom_call.1} parent=27 // pred_region
          %s276 = ssub.s32 128, 128
          %277 = vsyncadd %s268, %s276
          %s278 = sadd.s32 %s25, %s24
          %s279 = smul.addr %s278, 128
          %s280 = scalar_lea.hbm %s2, %s279
          %s282 = sshll.u32 %s271, 4
          %s283 = int_to_ptr.vmem [resolvable:$true] %s282
          %285 = dma.vmem_to_hbm [thread:$0]  %s283, 128, %s280, %s268
        $region40: #{tpu_custom_call.1} parent=27 // pred_fallthru
          _
      $region28: #{tpu_custom_call.1} parent=5 // pred_fallthru
        _
      %p286 = scmp.le.s32.totalorder 2, %s15
      // Predicated region
      $region41: #{tpu_custom_call.1} parent=5 // pred_check
        %p287 = pneg %p286
      $region42: #{tpu_custom_call.1} parent=5 // pred_check_branch
        %289 = sbr.rel (%p287) target = $region44
      $region43: #{tpu_custom_call.1} parent=5 // pred_region
        %s290 = ssub.s32 %s15, 2
        // Predicated region
        $region45: #{tpu_custom_call.1} parent=43 // pred_check
          %p291 = pneg %p107
        $region46: #{tpu_custom_call.1} parent=43 // pred_check_branch
          %293 = sbr.rel (%p291) target = $region48
        $region47: #{tpu_custom_call.1} parent=43 // pred_region
          %s294 = sand.u32 %s92, 1
          %s295 = scalar_lea.sflag [#allocation4], %s294
          %s296 = sand.u32 %s92, 1
          %s297 = smul.addr %s296, 8
          %s298 = scalar_lea.vmem [#allocation7], %s297
          %299 = dma.done %s295, 128
        $region48: #{tpu_custom_call.1} parent=43 // pred_fallthru
          _
      $region44: #{tpu_custom_call.1} parent=5 // pred_fallthru
        _
    $region6: #{tpu_custom_call.1} parent=1 // loop_footer
      %s19 = sadd.s32 1, %s15
    $region7: #{tpu_custom_call.1} parent=1 // loop_footer_branch
      %14 = sbr.rel target = $region3
    $region8: #{tpu_custom_call.1} parent=1 // loop_exit
      _
    %300 = vsyncpa [#allocation3], 1
    %s301 = scalar_lea.sflag [#allocation3], 1
    %302 = vsyncpa %s301, 1
    %303 = vsyncpa [#allocation6], 1
    %s304 = scalar_lea.sflag [#allocation6], 1
    %305 = vsyncpa %s304, 1
    %306 = vsyncpa [#allocation4], 1
    %s307 = scalar_lea.sflag [#allocation4], 1
    %308 = vsyncpa %s307, 1

</llo_original>
